<compile_context>
chip_gen: v7x
topology: tpu7x:2x2x1
jax: 0.10.0
libtpu: 0.0.40
codegen_flags: <defaults>
</compile_context>

<pallas_src>
import functools

import jax
import jax.numpy as jnp
from jax.experimental import pallas as pl
from jax.experimental.pallas import tpu as pltpu

_LANE = 128
_SINGLE_BLOCK_BYTES = 1 << 20        # below this: one block, no grid split


def _scale_kernel(scale_ref, g_ref, o_ref):
    # scale lives in SMEM as a (1,) f32.  Cast it once to the gradient dtype
    # so sub-32-bit gradients (bf16/f16) use native VALU multiplies instead of
    # unpack -> f32 -> repack; the kernel stays DMA-bound on v6e/v7x.
    s = scale_ref[0].astype(o_ref.dtype)
    o_ref[...] = g_ref[...] * s


@functools.lru_cache(maxsize=None)
def _tile_bytes():
    """Per-tile byte budget, generation aware.

    v7x (64 MiB VMEM/TC, ~3.2 TB/s HBM/TC): 8 MiB tiles amortize the per-step
    overhead; 4 double-buffered tiles = 32 MiB, still half of VMEM.
    v5e/v6e (128 MiB VMEM): 4 MiB tiles already reach ~86% of HBM roofline.
    """
    try:
        info = pltpu.get_tpu_info()
        vmem = int(getattr(info, "vmem_capacity_bytes", 128 << 20))
    except Exception:          # conservative default if the query is unavailable
        vmem = 128 << 20
    return (8 << 20) if vmem <= (64 << 20) else (4 << 20)


def _sublane_group(dtype):
    # Packed-row group for the second-to-last dim: 8 (f32), 16 (bf16/f16),
    # 32 (int8/fp8).  Keeps tile rows aligned to whole packed vregs.
    return max(8, 32 // max(1, jnp.dtype(dtype).itemsize))


def _pick_lane_width(n):
    for cand in (4096, 2048, 1024, 512, 256, _LANE):
        if n % cand == 0:
            return cand
    return None


def _scale_backward(g, scale):
    """backward: g * scale, streamed through VMEM at the HBM roofline."""
    if g.size == 0:
        return g

    orig_shape, dtype = g.shape, g.dtype
    itemsize = jnp.dtype(dtype).itemsize
    n = g.size

    width = _pick_lane_width(n)
    if width is None:
        # Ragged element count (not a multiple of 128).  A pad/kernel/slice
        # round trip would cost ~3x the HBM traffic of the scale itself, so the
        # fastest correct option is a single fused XLA multiply (1R + 1W).
        return (g * scale).astype(dtype)

    rows = n // width
    g2d = g.reshape(rows, width)            # row-major flatten: no copy
    total_bytes = n * itemsize
    sub = _sublane_group(dtype)

    if total_bytes <= _SINGLE_BLOCK_BYTES:
        tile_r = rows                       # one block; full dim is always legal
    else:
        # ~tile_bytes per block, rounded down to the packed-sublane group.
        budget_r = max(sub, (_tile_bytes() // (width * itemsize)) // sub * sub)
        # Keep >= 2 grid steps so ("parallel",) can use both v7x TensorCores.
        half_r = max(sub, (pl.cdiv(rows, 2) // sub) * sub)
        tile_r = min(budget_r, half_r)

    grid = (pl.cdiv(rows, tile_r),)         # last block may be partial (masked)

    # in + out, each double-buffered -> 4 tiles resident in VMEM, plus slack.
    vmem_limit = 4 * tile_r * width * itemsize + (2 << 20)
    vmem_limit = int(min(max(vmem_limit, 8 << 20), 48 << 20))

    scale_arr = jnp.asarray(scale, dtype=jnp.float32).reshape(1)

    out2d = pl.pallas_call(
        _scale_kernel,
        out_shape=jax.ShapeDtypeStruct((rows, width), dtype),
        grid=grid,
        in_specs=[
            pl.BlockSpec(memory_space=pltpu.MemorySpace.SMEM),   # scale (1,)
            pl.BlockSpec((tile_r, width), lambda i: (i, 0)),     # gradient tile
        ],
        out_specs=pl.BlockSpec((tile_r, width), lambda i: (i, 0)),
        input_output_aliases={1: 0},   # reuse the cotangent buffer for output
        compiler_params=pltpu.CompilerParams(
            dimension_semantics=("parallel",),
            vmem_limit_bytes=vmem_limit,
        ),
        cost_estimate=pl.CostEstimate(
            flops=n, transcendentals=0, bytes_accessed=2 * total_bytes),
    )(scale_arr, g2d)

    return out2d.reshape(orig_shape)


@jax.custom_vjp
def grad_scale(x, scale):
    """GradScale.forward: identity (no kernel, zero HBM traffic)."""
    del scale
    return x


def _grad_scale_fwd(x, scale):
    return x, scale


def _grad_scale_bwd(scale, g):
    # GradScaleFunction.backward: (output_gradients * scale, None)
    return _scale_backward(g, scale), jnp.zeros_like(scale)


grad_scale.defvjp(_grad_scale_fwd, _grad_scale_bwd)


class GradScale:
    """Mirror of the PyTorch nn.Module: holds a scale applied to gradients."""

    def __init__(self, scale):
        # Traced f32 scalar: changing `scale` never triggers a recompile.
        self.scale = jnp.asarray(scale, dtype=jnp.float32)

    def __call__(self, inputs):
        return grad_scale(inputs, self.scale)


if __name__ == "__main__":
    key = jax.random.PRNGKey(0)
    x = jax.random.normal(key, (2, 4, 16, 16), dtype=jnp.float32)  # NCHW

    module = GradScale(scale=0.5)

    # Forward: identity (no kernel).
    y = module(x)
    jax.block_until_ready(y)
    assert y.shape == x.shape and y.dtype == x.dtype
    assert jnp.allclose(y, x), "forward must be identity"

    # Backward: gradients scaled by `scale` (single-block Pallas kernel path).
    g = jax.grad(lambda a: jnp.sum(module(a) * 3.0))(x)
    jax.block_until_ready(g)
    assert jnp.allclose(g, jnp.full_like(x, 1.5), atol=1e-6), \
        "backward must scale gradients by `scale`"

    # Multi-tile path (grid >= 2 steps, input/output aliasing), f32.
    x3 = jax.random.normal(jax.random.PRNGKey(2), (512, 2048), dtype=jnp.float32)
    module3 = GradScale(scale=2.0)
    g3 = jax.grad(lambda a: jnp.sum(module3(a)))(x3)
    jax.block_until_ready(g3)
    assert jnp.allclose(g3, jnp.full_like(x3, 2.0), atol=1e-6)

    # bf16 path: native-dtype multiply inside the kernel.
    x4 = jax.random.normal(jax.random.PRNGKey(3), (128, 256), dtype=jnp.bfloat16)
    module4 = GradScale(scale=0.5)
    g4 = jax.grad(lambda a: jnp.sum(module4(a).astype(jnp.float32)))(x4)
    jax.block_until_ready(g4)
    assert g4.dtype == x4.dtype
    assert jnp.allclose(g4.astype(jnp.float32), jnp.full(x4.shape, 0.5), atol=1e-2)

    # Ragged size (105 elements): copy-free XLA fallback path.
    x2 = jax.random.normal(jax.random.PRNGKey(1), (3, 5, 7), dtype=jnp.bfloat16)
    module2 = GradScale(scale=0.25)
    g2 = jax.grad(lambda a: jnp.sum((module2(a) * 2.0).astype(jnp.float32)))(x2)
    jax.block_until_ready(g2)
    assert g2.shape == x2.shape and g2.dtype == x2.dtype
    assert jnp.allclose(g2.astype(jnp.float32), jnp.full(x2.shape, 0.5), atol=1e-2)

    print("KERNEL_OK")
</pallas_src>

<mosaic_0001>
module attributes {stable_mosaic.version = 11 : i64} {
  func.func @_scale_kernel(%arg0: i32, %arg1: memref<1xf32, #tpu.memory_space<smem>>, %arg2: memref<1x2048xf32, #tpu.memory_space<vmem>>, %arg3: memref<1x2048xf32, #tpu.memory_space<vmem>>) attributes {dimension_semantics = [#tpu.dimension_semantics<parallel>], iteration_bounds = array<i64: 1>, scalar_prefetch = 0 : i64, scratch_operands = 0 : i64, tpu.core_type = #tpu.core_type<tc>, window_params = [{transform_indices = @transform_0, window_bounds = array<i64: 1>}, {transform_indices = @transform_1, window_bounds = array<i64: 1, 2048>}, {transform_indices = @transform_2, window_bounds = array<i64: 1, 2048>}]} {
    %c0 = arith.constant 0 : index
    %0 = memref.load %arg1[%c0] : memref<1xf32, #tpu.memory_space<smem>>
    %c0_0 = arith.constant 0 : index
    %c0_1 = arith.constant 0 : index
    %1 = vector.load %arg2[%c0_0, %c0_1] : memref<1x2048xf32, #tpu.memory_space<vmem>>, vector<1x2048xf32>
    %2 = vector.broadcast %0 : f32 to vector<1x2048xf32>
    %3 = arith.mulf %1, %2 : vector<1x2048xf32>
    %c0_2 = arith.constant 0 : index
    %c0_3 = arith.constant 0 : index
    %4 = vector.load %arg3[%c0_2, %c0_3] : memref<1x2048xf32, #tpu.memory_space<vmem>>, vector<1x2048xf32>
    tpu.vector_store %arg3[%c0_2, %c0_3], %3 {strides = array<i32>} : memref<1x2048xf32, #tpu.memory_space<vmem>>, vector<1x2048xf32>,
    return
  }
  func.func @transform_0(%arg0: i32) -> i32 {
    %c0_i32 = arith.constant 0 : i32
    %c0_i32_0 = arith.constant 0 : i32
    return %c0_i32 : i32
  }
  func.func @transform_1(%arg0: i32) -> (i32, i32) {
    %c0_i32 = arith.constant 0 : i32
    %c0_i32_0 = arith.constant 0 : i32
    return %arg0, %c0_i32 : i32, i32
  }
  func.func @transform_2(%arg0: i32) -> (i32, i32) {
    %c0_i32 = arith.constant 0 : i32
    %c0_i32_0 = arith.constant 0 : i32
    return %arg0, %c0_i32 : i32, i32
  }
}

</mosaic_0001>

<llo_original>
// kernel: tpu_custom_call.1
$region0: #{tpu_custom_call.1}
  #allocation0 [shape = 'u32[]', space=smem, size = 0x4, offset = 0x4, fixed_abs, tag = 'smem constant byte address 0x4 - core index']
  #allocation1 [shape = 'u32[144,128]{1,0:T(1,128)}', space=vmem, size = 0x12000, scoped, tag = 'internal scratch']
  #allocation2 [shape = 'f32[1]{0:T(128)S(6)}', space=smem, size = 0x200, scoped, tag = 'scoped memory for tpu_custom_call.1']
  %s0 = inlined_call_operand.<no memory space> [shape: f32[1], index: 0, kind: input, shape index: {}]
  %s1 = inlined_call_operand.hbm [shape: f32[1,2048], index: 1, kind: input, shape index: {}, may-alias: {1,2}]
  %s2 = inlined_call_operand.hbm [shape: f32[1,2048], index: 2, kind: output, shape index: {}, may-alias: {1,2}]
  %s3 = sld [smem:[#allocation0]]
  $region22: #{tpu_custom_call.1} parent=0
    _
  %s5 = ssub.s32 1, %s3
  %s6 = scalar_select 0, %s5, %s3
  %7 = sst [smem:[#allocation2]] %s0
  $region1: #{tpu_custom_call.1} parent=0
    #allocation3 [shape = 'u8[8192]{0}', space=vmem, size = 0x2000, scoped, tag = 'input window, operand 1, single buffered']
    #allocation4 [shape = 's32[1]{0}', space=sflag, size = 0x4, scoped, tag = 'scoped memory for tpu_custom_call.1']
    #allocation5 [shape = 's32[1]{0}', space=sflag, size = 0x4, scoped, tag = 'scoped memory for tpu_custom_call.1']
    #allocation6 [shape = 'u8[8192]{0}', space=vmem, size = 0x2000, scoped, tag = 'output window, operand 0, single buffered']
    %8 = vsyncpa [#allocation4], 0
    %9 = vsyncpa [#allocation5], 0
    // Predicated region
    $region2: #{tpu_custom_call.1} parent=1 // pred_check
      _
    $region3: #{tpu_custom_call.1} parent=1 // pred_check_branch
      %11 = sbr.rel (0) target = $region5
    $region4: #{tpu_custom_call.1} parent=1 // pred_region
      _
    $region5: #{tpu_custom_call.1} parent=1 // pred_fallthru
      _
    // Predicated region
    $region6: #{tpu_custom_call.1} parent=1 // pred_check
      _
    $region7: #{tpu_custom_call.1} parent=1 // pred_check_branch
      %13 = sbr.rel (0) target = $region9
    $region8: #{tpu_custom_call.1} parent=1 // pred_region
      %s15 = ssub.s32 256, 256
      %16 = vsyncadd [#allocation4], %s15
      %s18 = sshll.u32 [#allocation3], 4
      %s19 = int_to_ptr.vmem [resolvable:$true] %s18
      %21 = dma.hbm_to_vmem [thread:$0]  %s1, 256, %s19, [#allocation4]
    $region9: #{tpu_custom_call.1} parent=1 // pred_fallthru
      _
    // Predicated region
    $region10: #{tpu_custom_call.1} parent=1 // pred_check
      _
    $region11: #{tpu_custom_call.1} parent=1 // pred_check_branch
      %23 = sbr.rel (0) target = $region13
    $region12: #{tpu_custom_call.1} parent=1 // pred_region
      %24 = dma.done [#allocation4], 256
    $region13: #{tpu_custom_call.1} parent=1 // pred_fallthru
      _
    %s25 = sld [smem:[#allocation2]]
    %v26 = vld [vmem:[#allocation3] sm:$0xff]
    %v27 = vld [vmem:[#allocation3 + $0x8] sm:$0xff]
    %v28 = vstv %s25
    %v29 = vmul.f32 %v26, %v28
    %v30 = vmul.f32 %v27, %v28
    %31 = vst [vmem:[#allocation6] sm:$0xff] %v29
    %32 = vst [vmem:[#allocation6 + $0x8] sm:$0xff] %v30
    // Predicated region
    $region14: #{tpu_custom_call.1} parent=1 // pred_check
      _
    $region15: #{tpu_custom_call.1} parent=1 // pred_check_branch
      %34 = sbr.rel (0) target = $region17
    $region16: #{tpu_custom_call.1} parent=1 // pred_region
      %s36 = ssub.s32 256, 256
      %37 = vsyncadd [#allocation5], %s36
      %s39 = sshll.u32 [#allocation6], 4
      %s40 = int_to_ptr.vmem [resolvable:$true] %s39
      %42 = dma.vmem_to_hbm [thread:$0]  %s40, 256, %s2, [#allocation5]
    $region17: #{tpu_custom_call.1} parent=1 // pred_fallthru
      _
    // Predicated region
    $region18: #{tpu_custom_call.1} parent=1 // pred_check
      _
    $region19: #{tpu_custom_call.1} parent=1 // pred_check_branch
      %44 = sbr.rel (0) target = $region21
    $region20: #{tpu_custom_call.1} parent=1 // pred_region
      %45 = dma.done [#allocation5], 256
    $region21: #{tpu_custom_call.1} parent=1 // pred_fallthru
      _
    %46 = vsyncpa [#allocation4], 1
    %47 = vsyncpa [#allocation5], 1

</llo_original>
